<compile_context>
chip_gen: v7x
topology: tpu7x:2x2x1
jax: 0.10.0
libtpu: 0.0.40
codegen_flags: <defaults>
</compile_context>

<pallas_src>
import functools

import jax
import jax.numpy as jnp
from jax.experimental import pallas as pl
from jax.experimental.pallas import tpu as pltpu

LANE = 128
TARGET_BLOCK_BYTES = 2 * 1024 * 1024   # ~2 MiB per block (in+out double-buffered = 8 MiB)
SINGLE_BLOCK_MAX_ROWS = 512            # below this, one full-extent block (no split)
RAGGED_TILE_LANES = 32768              # lane tile for the rare large-ragged case (mult of 128)


def _threshold_kernel(thr_ref, x_ref, o_ref, *, sharpness, constraint_min,
                      constraint_max, use_soft):
    """Elementwise threshold-gating kernel.

    thr_ref : SMEM (1,) f32 learnable threshold parameter
    x_ref   : VMEM input tile
    o_ref   : VMEM output tile
    """
    x = x_ref[...]
    raw_thr = thr_ref[0]                          # f32 scalar from SMEM
    xf = x.astype(jnp.float32)
    if use_soft:
        # soft / training path: x * sigmoid(sharpness * (x - clamp(threshold)))
        # sigmoid(z) == 0.5 * (tanh(z / 2) + 1); tanh runs on the EUP slot.
        c_thr = jnp.clip(raw_thr, constraint_min, constraint_max)
        z = (0.5 * sharpness) * (xf - c_thr)
        mask = 0.5 * jnp.tanh(z) + 0.5
        o_ref[...] = (xf * mask).astype(o_ref.dtype)
    else:
        # hard / inference path: exact step on the *unclamped* threshold,
        # compared in f32 (matches PyTorch's promoted compare).  Single vselect.
        o_ref[...] = jnp.where(xf >= raw_thr, x, jnp.zeros_like(x))


def _round_up(a, b):
    return ((a + b - 1) // b) * b


def _pick_tile_rows(rows, itemsize):
    """Row-tile for the [rows, 128] slab layout.

    - rows <= SINGLE_BLOCK_MAX_ROWS: full-extent block (always legal, 1 grid step).
    - otherwise: even number of steps (>= 2) so v7x shards across both TCs,
      block capped at ~TARGET_BLOCK_BYTES, rows rounded to the dtype's sublane
      packing (8 f32 / 16 bf16 / 32 int8).
    """
    pack = max(8, 32 // max(1, itemsize))
    max_rows = max(pack, (TARGET_BLOCK_BYTES // (LANE * itemsize)) // pack * pack)
    if rows <= SINGLE_BLOCK_MAX_ROWS or rows <= pack:
        return rows
    if rows <= 2 * max_rows:
        return min(max_rows, _round_up(pl.cdiv(rows, 2), pack))
    steps = pl.cdiv(rows, max_rows)
    if steps % 2:
        steps += 1                                 # even step count balances the 2 v7x TCs
    return max(pack, min(max_rows, _round_up(pl.cdiv(rows, steps), pack)))


def threshold_activation(x, threshold, *, constraint_min=0.0,
                         constraint_max=100.0, sharpness=10.0,
                         hard_forward=True, training=False,
                         donate_input=False):
    """JAX wrapper: presents x as a lane-dense slab and runs the gating kernel."""
    orig_shape = x.shape
    n = x.size
    itemsize = jnp.dtype(x.dtype).itemsize

    # 32-bit scalar in SMEM (robust for bf16 activations too; promoted compare in-kernel).
    thr = jnp.asarray(threshold, jnp.float32).reshape(1)

    use_soft = bool(training or not hard_forward)
    kernel = functools.partial(
        _threshold_kernel,
        sharpness=float(sharpness),
        constraint_min=float(constraint_min),
        constraint_max=float(constraint_max),
        use_soft=use_soft,
    )

    if n % LANE == 0:
        # Fast path: free reshape to a lane-dense [rows, 128] slab.
        rows = n // LANE
        slab = x.reshape(rows, LANE)
        tile_rows = _pick_tile_rows(rows, itemsize)
        grid = (pl.cdiv(rows, tile_rows),)
        block = (tile_rows, LANE)
        index_map = lambda i: (i, 0)
        slab_shape = (rows, LANE)
    else:
        # Ragged path: flat (1, n) layout, no pad copy / no tail slice.
        # Small n -> one full-extent block; large n -> 128-multiple lane tiles,
        # Pallas masks the partial boundary block on read/write.
        slab = x.reshape(1, n)
        tile_n = n if n <= RAGGED_TILE_LANES else RAGGED_TILE_LANES
        grid = (pl.cdiv(n, tile_n),)
        block = (1, tile_n)
        index_map = lambda i: (0, i)
        slab_shape = (1, n)

    out = pl.pallas_call(
        kernel,
        out_shape=jax.ShapeDtypeStruct(slab_shape, x.dtype),
        grid=grid,
        in_specs=[
            pl.BlockSpec(memory_space=pltpu.MemorySpace.SMEM),   # threshold scalar
            pl.BlockSpec(block, index_map),                      # input tile
        ],
        out_specs=pl.BlockSpec(block, index_map),
        input_output_aliases=({1: 0} if donate_input else {}),
        compiler_params=pltpu.CompilerParams(
            dimension_semantics=("parallel",)),                  # v7x: shard rows over 2 TCs
    )(thr, slab)

    return out.reshape(orig_shape)


def _reference(x, threshold, *, constraint_min=0.0, constraint_max=100.0,
               sharpness=10.0, hard_forward=True, training=False):
    c_thr = jnp.clip(threshold, constraint_min, constraint_max)
    if training or not hard_forward:
        mask = jax.nn.sigmoid(sharpness * (x - c_thr))
    else:
        mask = (x >= threshold).astype(x.dtype)
    return x * mask


if __name__ == "__main__":
    threshold = jnp.float32(0.5)   # deterministic param init: initial_threshold = 0.5

    # --- primary case: NCHW conv feature map, numel % 128 == 0, single block ---
    x = jax.random.normal(jax.random.PRNGKey(0), (2, 4, 16, 16), dtype=jnp.float32)

    out_hard = jax.block_until_ready(
        threshold_activation(x, threshold, hard_forward=True, training=False))
    ref_hard = _reference(x, threshold, hard_forward=True, training=False)
    assert out_hard.shape == x.shape and out_hard.dtype == x.dtype
    assert jnp.allclose(out_hard, ref_hard, atol=1e-6)

    out_soft = jax.block_until_ready(
        threshold_activation(x, threshold, hard_forward=True, training=True))
    ref_soft = _reference(x, threshold, hard_forward=True, training=True)
    assert jnp.allclose(out_soft, ref_soft, atol=1e-5)

    # --- medium case: still a single full-extent block (no manufactured tail) ---
    x2 = jax.random.normal(jax.random.PRNGKey(1), (4, 8, 28, 28), dtype=jnp.float32)
    out2 = jax.block_until_ready(
        threshold_activation(x2, threshold, hard_forward=True, training=False))
    ref2 = _reference(x2, threshold, hard_forward=True, training=False)
    assert jnp.allclose(out2, ref2, atol=1e-6)

    # --- larger case exercising a 2-step grid (both v7x TCs on real hardware) ---
    x3 = jax.random.normal(jax.random.PRNGKey(2), (4, 32, 32, 32), dtype=jnp.float32)
    out3h = jax.block_until_ready(
        threshold_activation(x3, threshold, hard_forward=True, training=False))
    ref3h = _reference(x3, threshold, hard_forward=True, training=False)
    assert jnp.allclose(out3h, ref3h, atol=1e-6)
    out3s = jax.block_until_ready(
        threshold_activation(x3, threshold, hard_forward=False, training=False))
    ref3s = _reference(x3, threshold, hard_forward=False, training=False)
    assert jnp.allclose(out3s, ref3s, atol=1e-5)

    # --- ragged case (numel not a multiple of 128): no pad copy, no tail slice ---
    x4 = jax.random.normal(jax.random.PRNGKey(3), (3, 5, 7), dtype=jnp.float32)
    out4 = jax.block_until_ready(
        threshold_activation(x4, threshold, hard_forward=True, training=True))
    ref4 = _reference(x4, threshold, hard_forward=True, training=True)
    assert out4.shape == x4.shape
    assert jnp.allclose(out4, ref4, atol=1e-5)

    print("KERNEL_OK")
</pallas_src>

<mosaic_0001>
module attributes {stable_mosaic.version = 11 : i64} {
  func.func @_threshold_kernel(%arg0: i32, %arg1: memref<1xf32, #tpu.memory_space<smem>>, %arg2: memref<16x128xf32, #tpu.memory_space<vmem>>, %arg3: memref<16x128xf32, #tpu.memory_space<vmem>>) attributes {dimension_semantics = [#tpu.dimension_semantics<parallel>], iteration_bounds = array<i64: 1>, scalar_prefetch = 0 : i64, scratch_operands = 0 : i64, tpu.core_type = #tpu.core_type<tc>, window_params = [{transform_indices = @transform_0, window_bounds = array<i64: 1>}, {transform_indices = @transform_1, window_bounds = array<i64: 16, 128>}, {transform_indices = @transform_2, window_bounds = array<i64: 16, 128>}]} {
    %c0 = arith.constant 0 : index
    %c0_0 = arith.constant 0 : index
    %0 = vector.load %arg2[%c0, %c0_0] : memref<16x128xf32, #tpu.memory_space<vmem>>, vector<16x128xf32>
    %c0_1 = arith.constant 0 : index
    %1 = memref.load %arg1[%c0_1] : memref<1xf32, #tpu.memory_space<smem>>
    %2 = vector.broadcast %1 : f32 to vector<16x128xf32>
    %3 = arith.cmpf oge, %0, %2 : vector<16x128xf32>
    %cst = arith.constant 0.000000e+00 : f32
    %4 = vector.broadcast %cst : f32 to vector<16x128xf32>
    %5 = arith.select %3, %0, %4 : vector<16x128xi1>, vector<16x128xf32>
    %c0_2 = arith.constant 0 : index
    %c0_3 = arith.constant 0 : index
    %6 = vector.load %arg3[%c0_2, %c0_3] : memref<16x128xf32, #tpu.memory_space<vmem>>, vector<16x128xf32>
    tpu.vector_store %arg3[%c0_2, %c0_3], %5 {strides = array<i32>} : memref<16x128xf32, #tpu.memory_space<vmem>>, vector<16x128xf32>,
    return
  }
  func.func @transform_0(%arg0: i32) -> i32 {
    %c0_i32 = arith.constant 0 : i32
    %c0_i32_0 = arith.constant 0 : i32
    return %c0_i32 : i32
  }
  func.func @transform_1(%arg0: i32) -> (i32, i32) {
    %c0_i32 = arith.constant 0 : i32
    %c0_i32_0 = arith.constant 0 : i32
    return %arg0, %c0_i32 : i32, i32
  }
  func.func @transform_2(%arg0: i32) -> (i32, i32) {
    %c0_i32 = arith.constant 0 : i32
    %c0_i32_0 = arith.constant 0 : i32
    return %arg0, %c0_i32 : i32, i32
  }
}

</mosaic_0001>

<llo_original>
// kernel: tpu_custom_call.1
$region0: #{tpu_custom_call.1}
  #allocation0 [shape = 'u32[]', space=smem, size = 0x4, offset = 0x4, fixed_abs, tag = 'smem constant byte address 0x4 - core index']
  #allocation1 [shape = 'u32[144,128]{1,0:T(1,128)}', space=vmem, size = 0x12000, scoped, tag = 'internal scratch']
  #allocation2 [shape = 'f32[1]{0:T(128)S(6)}', space=smem, size = 0x200, scoped, tag = 'scoped memory for tpu_custom_call.1']
  %s0 = inlined_call_operand.<no memory space> [shape: f32[1], index: 0, kind: input, shape index: {}]
  %s1 = inlined_call_operand.hbm [shape: f32[16,128], index: 1, kind: input, shape index: {}]
  %s2 = inlined_call_operand.hbm [shape: f32[16,128], index: 2, kind: output, shape index: {}]
  %s3 = sld [smem:[#allocation0]]
  $region22: #{tpu_custom_call.1} parent=0
    _
  %s5 = ssub.s32 1, %s3
  %s6 = scalar_select 0, %s5, %s3
  %7 = sst [smem:[#allocation2]] %s0
  $region1: #{tpu_custom_call.1} parent=0
    #allocation3 [shape = 'u8[8192]{0}', space=vmem, size = 0x2000, scoped, tag = 'input window, operand 1, single buffered']
    #allocation4 [shape = 's32[1]{0}', space=sflag, size = 0x4, scoped, tag = 'scoped memory for tpu_custom_call.1']
    #allocation5 [shape = 's32[1]{0}', space=sflag, size = 0x4, scoped, tag = 'scoped memory for tpu_custom_call.1']
    #allocation6 [shape = 'u8[8192]{0}', space=vmem, size = 0x2000, scoped, tag = 'output window, operand 0, single buffered']
    %8 = vsyncpa [#allocation4], 0
    %9 = vsyncpa [#allocation5], 0
    // Predicated region
    $region2: #{tpu_custom_call.1} parent=1 // pred_check
      _
    $region3: #{tpu_custom_call.1} parent=1 // pred_check_branch
      %11 = sbr.rel (0) target = $region5
    $region4: #{tpu_custom_call.1} parent=1 // pred_region
      _
    $region5: #{tpu_custom_call.1} parent=1 // pred_fallthru
      _
    // Predicated region
    $region6: #{tpu_custom_call.1} parent=1 // pred_check
      _
    $region7: #{tpu_custom_call.1} parent=1 // pred_check_branch
      %13 = sbr.rel (0) target = $region9
    $region8: #{tpu_custom_call.1} parent=1 // pred_region
      %s15 = ssub.s32 256, 256
      %16 = vsyncadd [#allocation4], %s15
      %s17 = sshll.u32 [#allocation3], 4
      %s18 = int_to_ptr.vmem [resolvable:$true] %s17
      %23 = dma.hbm_to_vmem [thread:$0]  %s1, 256, %s18, [#allocation4], 128, 128, 8
    $region9: #{tpu_custom_call.1} parent=1 // pred_fallthru
      _
    // Predicated region
    $region10: #{tpu_custom_call.1} parent=1 // pred_check
      _
    $region11: #{tpu_custom_call.1} parent=1 // pred_check_branch
      %25 = sbr.rel (0) target = $region13
    $region12: #{tpu_custom_call.1} parent=1 // pred_region
      %26 = dma.done [#allocation4], 256
    $region13: #{tpu_custom_call.1} parent=1 // pred_fallthru
      _
    %v27 = vld [vmem:[#allocation3] sm:$0xff]
    %v28 = vld [vmem:[#allocation3 + $0x8] sm:$0xff]
    %s29 = sld [smem:[#allocation2]]
    %v30 = vstv %s29
    %vm31 = vcmp.ge.f32.partialorder %v27, %v30
    %vm32 = vcmp.ge.f32.partialorder %v28, %v30
    %v33 = vsel %vm31, %v27, 0.0
    %v34 = vsel %vm32, %v28, 0.0
    %35 = vst [vmem:[#allocation6] sm:$0xff] %v33
    %36 = vst [vmem:[#allocation6 + $0x8] sm:$0xff] %v34
    // Predicated region
    $region14: #{tpu_custom_call.1} parent=1 // pred_check
      _
    $region15: #{tpu_custom_call.1} parent=1 // pred_check_branch
      %38 = sbr.rel (0) target = $region17
    $region16: #{tpu_custom_call.1} parent=1 // pred_region
      %s40 = ssub.s32 256, 256
      %41 = vsyncadd [#allocation5], %s40
      %s42 = sshll.u32 [#allocation6], 4
      %s43 = int_to_ptr.vmem [resolvable:$true] %s42
      %48 = dma.vmem_to_hbm [thread:$0]  %s43, 256, %s2, [#allocation5], 128, 128, 8
    $region17: #{tpu_custom_call.1} parent=1 // pred_fallthru
      _
    // Predicated region
    $region18: #{tpu_custom_call.1} parent=1 // pred_check
      _
    $region19: #{tpu_custom_call.1} parent=1 // pred_check_branch
      %50 = sbr.rel (0) target = $region21
    $region20: #{tpu_custom_call.1} parent=1 // pred_region
      %51 = dma.done [#allocation5], 256
    $region21: #{tpu_custom_call.1} parent=1 // pred_fallthru
      _
    %52 = vsyncpa [#allocation4], 1
    %53 = vsyncpa [#allocation5], 1

</llo_original>
